<compile_context>
chip_gen: v7x
topology: tpu7x:2x2x1
jax: 0.10.0
libtpu: 0.0.40
codegen_flags: <defaults>
</compile_context>

<pallas_src>
import functools

import jax
import jax.numpy as jnp
from jax import lax
from jax.experimental import pallas as pl
from jax.experimental.pallas import tpu as pltpu

LANES = 128
_MAX_BLOCK_ROWS = 1024
_MAX_BLOCK_BYTES = 4 * 1024 * 1024  # per logits block (Pallas double-buffers it)


def _masked_ce_kernel(x_ref, t_ref, out_ref, acc_sum, acc_cnt, *,
                      n_rows, block_n, num_classes):
    """Grid reduction: accumulates masked CE sum and valid count per row."""
    i = pl.program_id(0)

    @pl.when(i == 0)
    def _():
        acc_sum[...] = jnp.zeros_like(acc_sum)
        acc_cnt[...] = jnp.zeros_like(acc_cnt)

    x = x_ref[...].astype(jnp.float32)   # (block_n, C) logits
    t = t_ref[...]                       # (block_n, 1) int32 class ids

    # Mask: valid class id AND row inside the real array. The final block may
    # be partial; its out-of-bounds rows contain garbage and must not touch
    # either the loss sum or the denominator count.
    row = i * block_n + lax.broadcasted_iota(jnp.int32, (block_n, 1), 0)
    valid = (t >= 0) & (t < num_classes) & (row < n_rows)    # (block_n, 1)

    # Numerically stable per-row cross entropy: logsumexp(x) - x[target].
    m = jnp.max(x, axis=-1, keepdims=True)
    lse = m + jnp.log(jnp.sum(jnp.exp(x - m), axis=-1, keepdims=True))
    cls = lax.broadcasted_iota(jnp.int32, x.shape, 1)
    picked = jnp.sum(jnp.where(cls == t, x, 0.0), axis=-1, keepdims=True)
    loss = lse - picked                                       # (block_n, 1)

    # VPU-only per-row accumulation; cross-row reduce deferred to the epilogue.
    acc_sum[...] += jnp.where(valid, loss, 0.0)
    acc_cnt[...] += valid.astype(jnp.float32)

    @pl.when(i == pl.num_programs(0) - 1)
    def _():
        total = jnp.sum(acc_sum[...])
        count = jnp.sum(acc_cnt[...])
        lane = lax.broadcasted_iota(jnp.int32, (1, LANES), 1)
        out_ref[...] = jnp.where(lane == 0, total,
                                 jnp.where(lane == 1, count, 0.0))


def _choose_block_rows(n_rows, num_classes, itemsize):
    """Largest row block <= 1024 rows and <= ~4 MiB of logits per step."""
    rows_by_vmem = max(8, _MAX_BLOCK_BYTES // max(1, num_classes * itemsize))
    block = min(_MAX_BLOCK_ROWS, rows_by_vmem)
    block = max(8, (block // 8) * 8)
    if n_rows <= block:
        return n_rows  # full-dim block is always a legal block shape
    return block


@functools.partial(jax.jit, static_argnames=("num_classes",))
def masked_cross_entropy_loss(inputs, targets, num_classes):
    """JAX/Pallas equivalent of MaskedCrossEntropyLoss.forward.

    inputs:  (N, num_classes) logits (f32 or bf16).
    targets: (N,) integer class ids; ids outside [0, num_classes) are ignored.
    Returns a scalar f32 loss (0.0 if there are no valid targets).
    """
    n, c = inputs.shape
    assert c == num_classes
    t2 = targets.reshape(n, 1).astype(jnp.int32)

    block_n = _choose_block_rows(n, c, jnp.dtype(inputs.dtype).itemsize)
    grid = (pl.cdiv(n, block_n),)

    kernel = functools.partial(_masked_ce_kernel, n_rows=n, block_n=block_n,
                               num_classes=num_classes)

    out = pl.pallas_call(
        kernel,
        out_shape=jax.ShapeDtypeStruct((1, LANES), jnp.float32),
        grid_spec=pltpu.PrefetchScalarGridSpec(
            num_scalar_prefetch=0,
            grid=grid,
            in_specs=[
                pl.BlockSpec((block_n, c), lambda i: (i, 0)),
                pl.BlockSpec((block_n, 1), lambda i: (i, 0)),
            ],
            out_specs=pl.BlockSpec((1, LANES), lambda i: (0, 0)),
            scratch_shapes=[
                pltpu.VMEM((block_n, 1), jnp.float32),
                pltpu.VMEM((block_n, 1), jnp.float32),
            ],
        ),
        compiler_params=pltpu.CompilerParams(
            dimension_semantics=("arbitrary",)),
        # TODO(synk): on v7x, split the row range across the 2 TensorCores
        # (leading "parallel" axis + per-core partial outputs) for ~2x.
    )(inputs, t2)

    total = out[0, 0]
    count = out[0, 1]
    # "if valid_mask.sum() == 0: return 0.0"
    return jnp.where(count > 0.0, total / jnp.maximum(count, 1.0),
                     jnp.float32(0.0))


def _reference_masked_ce(inputs, targets, num_classes):
    x = inputs.astype(jnp.float32)
    t = targets.astype(jnp.int32)
    valid = (t >= 0) & (t < num_classes)
    logp = jax.nn.log_softmax(x, axis=-1)
    safe_t = jnp.clip(t, 0, num_classes - 1)
    losses = -jnp.take_along_axis(logp, safe_t[:, None], axis=-1)[:, 0]
    cnt = jnp.sum(valid.astype(jnp.float32))
    total = jnp.sum(jnp.where(valid, losses, 0.0))
    return jnp.where(cnt > 0.0, total / jnp.maximum(cnt, 1.0), 0.0)


if __name__ == "__main__":
    key = jax.random.PRNGKey(0)

    # Shapes implied by the module: (batch, num_classes) logits, (batch,)
    # integer targets with some out-of-range labels that must be ignored.
    num_classes = 8
    for batch in (64, 2500):  # single-block case and multi-block/partial case
        k1, k2, key = jax.random.split(key, 3)
        logits = jax.random.normal(k1, (batch, num_classes), dtype=jnp.float32)
        targets = jax.random.randint(k2, (batch,), -2, num_classes + 1,
                                     dtype=jnp.int32)

        loss = jax.block_until_ready(
            masked_cross_entropy_loss(logits, targets, num_classes=num_classes))
        ref = jax.block_until_ready(
            _reference_masked_ce(logits, targets, num_classes))
        assert jnp.allclose(loss, ref, rtol=1e-5, atol=1e-6), (batch, loss, ref)

    print("KERNEL_OK")
</pallas_src>

<mosaic_0001>
module attributes {stable_mosaic.version = 11 : i64} {
  func.func @_masked_ce_kernel(%arg0: i32, %arg1: memref<64x8xf32, #tpu.memory_space<vmem>>, %arg2: memref<64x1xi32, #tpu.memory_space<vmem>>, %arg3: memref<1x128xf32, #tpu.memory_space<vmem>>, %arg4: memref<64x1xf32, #tpu.memory_space<vmem>>, %arg5: memref<64x1xf32, #tpu.memory_space<vmem>>) attributes {dimension_semantics = [#tpu.dimension_semantics<arbitrary>], iteration_bounds = array<i64: 1>, scalar_prefetch = 0 : i64, scratch_operands = 2 : i64, tpu.core_type = #tpu.core_type<tc>, window_params = [{transform_indices = @transform_0, window_bounds = array<i64: 64, 8>}, {transform_indices = @transform_1, window_bounds = array<i64: 64, 1>}, {pipeline_mode = #tpu.pipeline_mode<synchronous>, transform_indices = @transform_2, window_bounds = array<i64: 1, 128>}]} {
    %c0_i32 = arith.constant 0 : i32
    %0 = arith.cmpi eq, %arg0, %c0_i32 : i32
    %1 = arith.extui %0 : i1 to i32
    %c0_i32_0 = arith.constant 0 : i32
    %2 = arith.cmpi ne, %1, %c0_i32_0 : i32
    scf.if %2 {
      %cst_20 = arith.constant 0.000000e+00 : f32
      %47 = vector.broadcast %cst_20 : f32 to vector<64x1xf32>
      %c0_21 = arith.constant 0 : index
      %c0_22 = arith.constant 0 : index
      %48 = vector.load %arg4[%c0_21, %c0_22] : memref<64x1xf32, #tpu.memory_space<vmem>>, vector<64x1xf32>
      tpu.vector_store %arg4[%c0_21, %c0_22], %47 {strides = array<i32>} : memref<64x1xf32, #tpu.memory_space<vmem>>, vector<64x1xf32>,
      %cst_23 = arith.constant 0.000000e+00 : f32
      %49 = vector.broadcast %cst_23 : f32 to vector<64x1xf32>
      %c0_24 = arith.constant 0 : index
      %c0_25 = arith.constant 0 : index
      %50 = vector.load %arg5[%c0_24, %c0_25] : memref<64x1xf32, #tpu.memory_space<vmem>>, vector<64x1xf32>
      tpu.vector_store %arg5[%c0_24, %c0_25], %49 {strides = array<i32>} : memref<64x1xf32, #tpu.memory_space<vmem>>, vector<64x1xf32>,
    } else {
    }
    %c0 = arith.constant 0 : index
    %c0_1 = arith.constant 0 : index
    %3 = vector.load %arg1[%c0, %c0_1] : memref<64x8xf32, #tpu.memory_space<vmem>>, vector<64x8xf32>
    %c0_2 = arith.constant 0 : index
    %c0_3 = arith.constant 0 : index
    %4 = vector.load %arg2[%c0_2, %c0_3] : memref<64x1xi32, #tpu.memory_space<vmem>>, vector<64x1xi32>
    %c64_i32 = arith.constant 64 : i32
    %5 = arith.muli %arg0, %c64_i32 : i32
    %6 = tpu.iota {dimensions = array<i32: 0>} : vector<64x1xi32>
    %7 = vector.broadcast %5 : i32 to vector<64x1xi32>
    %8 = arith.addi %7, %6 : vector<64x1xi32>
    %c0_i32_4 = arith.constant 0 : i32
    %9 = vector.broadcast %c0_i32_4 : i32 to vector<64x1xi32>
    %10 = arith.cmpi sge, %4, %9 : vector<64x1xi32>
    %c8_i32 = arith.constant 8 : i32
    %11 = vector.broadcast %c8_i32 : i32 to vector<64x1xi32>
    %12 = arith.cmpi slt, %4, %11 : vector<64x1xi32>
    %13 = arith.andi %10, %12 : vector<64x1xi1>
    %c64_i32_5 = arith.constant 64 : i32
    %14 = vector.broadcast %c64_i32_5 : i32 to vector<64x1xi32>
    %15 = arith.cmpi slt, %8, %14 : vector<64x1xi32>
    %16 = arith.andi %13, %15 : vector<64x1xi1>
    %cst = arith.constant dense<0xFF800000> : vector<64xf32>
    %17 = vector.multi_reduction <maximumf>, %3, %cst [1] : vector<64x8xf32> to vector<64xf32>
    %18 = vector.shape_cast %17 : vector<64xf32> to vector<64x1xf32>
    %19 = vector.broadcast %18 : vector<64x1xf32> to vector<64x8xf32>
    %20 = arith.subf %3, %19 : vector<64x8xf32>
    %21 = math.exp %20 : vector<64x8xf32>
    %cst_6 = arith.constant dense<0.000000e+00> : vector<64xf32>
    %22 = vector.multi_reduction <add>, %21, %cst_6 [1] : vector<64x8xf32> to vector<64xf32>
    %23 = vector.shape_cast %22 : vector<64xf32> to vector<64x1xf32>
    %24 = math.log %23 : vector<64x1xf32>
    %25 = arith.addf %18, %24 : vector<64x1xf32>
    %26 = tpu.iota {dimensions = array<i32: 1>} : vector<64x8xi32>
    %27 = vector.broadcast %4 : vector<64x1xi32> to vector<64x8xi32>
    %28 = arith.cmpi eq, %26, %27 : vector<64x8xi32>
    %cst_7 = arith.constant 0.000000e+00 : f32
    %29 = vector.broadcast %cst_7 : f32 to vector<64x8xf32>
    %30 = arith.select %28, %3, %29 : vector<64x8xi1>, vector<64x8xf32>
    %cst_8 = arith.constant dense<0.000000e+00> : vector<64xf32>
    %31 = vector.multi_reduction <add>, %30, %cst_8 [1] : vector<64x8xf32> to vector<64xf32>
    %32 = vector.shape_cast %31 : vector<64xf32> to vector<64x1xf32>
    %33 = arith.subf %25, %32 : vector<64x1xf32>
    %c0_9 = arith.constant 0 : index
    %c0_10 = arith.constant 0 : index
    %34 = vector.load %arg4[%c0_9, %c0_10] : memref<64x1xf32, #tpu.memory_space<vmem>>, vector<64x1xf32>
    %cst_11 = arith.constant 0.000000e+00 : f32
    %35 = vector.broadcast %cst_11 : f32 to vector<64x1xf32>
    %36 = arith.select %16, %33, %35 : vector<64x1xi1>, vector<64x1xf32>
    %37 = arith.addf %34, %36 : vector<64x1xf32>
    %c0_12 = arith.constant 0 : index
    %c0_13 = arith.constant 0 : index
    %38 = vector.load %arg4[%c0_12, %c0_13] : memref<64x1xf32, #tpu.memory_space<vmem>>, vector<64x1xf32>
    tpu.vector_store %arg4[%c0_12, %c0_13], %37 {strides = array<i32>} : memref<64x1xf32, #tpu.memory_space<vmem>>, vector<64x1xf32>,
    %c0_14 = arith.constant 0 : index
    %c0_15 = arith.constant 0 : index
    %39 = vector.load %arg5[%c0_14, %c0_15] : memref<64x1xf32, #tpu.memory_space<vmem>>, vector<64x1xf32>
    %40 = arith.extui %16 : vector<64x1xi1> to vector<64x1xi32>
    %41 = arith.sitofp %40 : vector<64x1xi32> to vector<64x1xf32>
    %42 = arith.addf %39, %41 : vector<64x1xf32>
    %c0_16 = arith.constant 0 : index
    %c0_17 = arith.constant 0 : index
    %43 = vector.load %arg5[%c0_16, %c0_17] : memref<64x1xf32, #tpu.memory_space<vmem>>, vector<64x1xf32>
    tpu.vector_store %arg5[%c0_16, %c0_17], %42 {strides = array<i32>} : memref<64x1xf32, #tpu.memory_space<vmem>>, vector<64x1xf32>,
    %c0_i32_18 = arith.constant 0 : i32
    %44 = arith.cmpi eq, %arg0, %c0_i32_18 : i32
    %45 = arith.extui %44 : i1 to i32
    %c0_i32_19 = arith.constant 0 : i32
    %46 = arith.cmpi ne, %45, %c0_i32_19 : i32
    scf.if %46 {
      %c0_20 = arith.constant 0 : index
      %c0_21 = arith.constant 0 : index
      %47 = vector.load %arg4[%c0_20, %c0_21] : memref<64x1xf32, #tpu.memory_space<vmem>>, vector<64x1xf32>
      %48 = vector.shape_cast %47 : vector<64x1xf32> to vector<1x64x1xf32>
      %cst_22 = arith.constant dense<0.000000e+00> : vector<1xf32>
      %49 = vector.multi_reduction <add>, %48, %cst_22 [1, 2] : vector<1x64x1xf32> to vector<1xf32>
      %50 = vector.shape_cast %49 : vector<1xf32> to vector<1x1x1xf32>
      %51 = vector.extract %50[0, 0, 0] : f32 from vector<1x1x1xf32>
      %c0_23 = arith.constant 0 : index
      %c0_24 = arith.constant 0 : index
      %52 = vector.load %arg5[%c0_23, %c0_24] : memref<64x1xf32, #tpu.memory_space<vmem>>, vector<64x1xf32>
      %53 = vector.shape_cast %52 : vector<64x1xf32> to vector<1x64x1xf32>
      %cst_25 = arith.constant dense<0.000000e+00> : vector<1xf32>
      %54 = vector.multi_reduction <add>, %53, %cst_25 [1, 2] : vector<1x64x1xf32> to vector<1xf32>
      %55 = vector.shape_cast %54 : vector<1xf32> to vector<1x1x1xf32>
      %56 = vector.extract %55[0, 0, 0] : f32 from vector<1x1x1xf32>
      %57 = tpu.iota {dimensions = array<i32: 1>} : vector<1x128xi32>
      %c0_i32_26 = arith.constant 0 : i32
      %58 = vector.broadcast %c0_i32_26 : i32 to vector<1x128xi32>
      %59 = arith.cmpi eq, %57, %58 : vector<1x128xi32>
      %c1_i32 = arith.constant 1 : i32
      %60 = vector.broadcast %c1_i32 : i32 to vector<1x128xi32>
      %61 = arith.cmpi eq, %57, %60 : vector<1x128xi32>
      %cst_27 = arith.constant 0.000000e+00 : f32
      %62 = vector.broadcast %56 : f32 to vector<1x128xf32>
      %63 = vector.broadcast %cst_27 : f32 to vector<1x128xf32>
      %64 = arith.select %61, %62, %63 : vector<1x128xi1>, vector<1x128xf32>
      %65 = vector.broadcast %51 : f32 to vector<1x128xf32>
      %66 = arith.select %59, %65, %64 : vector<1x128xi1>, vector<1x128xf32>
      %c0_28 = arith.constant 0 : index
      %c0_29 = arith.constant 0 : index
      %67 = vector.load %arg3[%c0_28, %c0_29] : memref<1x128xf32, #tpu.memory_space<vmem>>, vector<1x128xf32>
      tpu.vector_store %arg3[%c0_28, %c0_29], %66 {strides = array<i32>} : memref<1x128xf32, #tpu.memory_space<vmem>>, vector<1x128xf32>,
    } else {
    }
    return
  }
  func.func @transform_0(%arg0: i32) -> (i32, i32) {
    %c0_i32 = arith.constant 0 : i32
    %c0_i32_0 = arith.constant 0 : i32
    return %arg0, %c0_i32 : i32, i32
  }
  func.func @transform_1(%arg0: i32) -> (i32, i32) {
    %c0_i32 = arith.constant 0 : i32
    %c0_i32_0 = arith.constant 0 : i32
    return %arg0, %c0_i32 : i32, i32
  }
  func.func @transform_2(%arg0: i32) -> (i32, i32) {
    %c0_i32 = arith.constant 0 : i32
    %c0_i32_0 = arith.constant 0 : i32
    %c0_i32_1 = arith.constant 0 : i32
    return %c0_i32, %c0_i32_0 : i32, i32
  }
}

</mosaic_0001>

<llo_original>
// kernel: masked_cross_entropy_loss.1
$region0: #{masked_cross_entropy_loss.1}
  #allocation0 [shape = 'u32[]', space=smem, size = 0x4, offset = 0x4, fixed_abs, tag = 'smem constant byte address 0x4 - core index']
  #allocation1 [shape = 'u32[144,128]{1,0:T(1,128)}', space=vmem, size = 0x12000, scoped, tag = 'internal scratch']
  #allocation2 [shape = 'f32[64,1]{1,0:T(8,128)}', space=vmem, size = 0x8000, scoped, tag = 'scratch operand']
  #allocation3 [shape = 'f32[64,1]{1,0:T(8,128)}', space=vmem, size = 0x8000, scoped, tag = 'scratch operand']
  %s0 = inlined_call_operand.vmem [shape: f32[64,8], index: 0, kind: input, shape index: {}]
  %s1 = inlined_call_operand.vmem [shape: s32[64,1], index: 1, kind: input, shape index: {}]
  %s2 = inlined_call_operand.vmem [shape: f32[1,128], index: 2, kind: output, shape index: {}]
  %s3 = sld [smem:[#allocation0]]
  $region26: #{masked_cross_entropy_loss.1} parent=0
    _
  %s5 = ssub.s32 1, %s3
  %s6 = scalar_select 0, %s5, %s3
  // Predicated region
  $region2: #{masked_cross_entropy_loss.1} parent=0 // pred_check
    _
  $region3: #{masked_cross_entropy_loss.1} parent=0 // pred_check_branch
    %8 = sbr.rel (0) target = $region5
  $region4: #{masked_cross_entropy_loss.1} parent=0 // pred_region
    _
  $region5: #{masked_cross_entropy_loss.1} parent=0 // pred_fallthru
    _
  // Predicated region
  $region6: #{masked_cross_entropy_loss.1} parent=0 // pred_check
    _
  $region7: #{masked_cross_entropy_loss.1} parent=0 // pred_check_branch
    %10 = sbr.rel (0) target = $region9
  $region8: #{masked_cross_entropy_loss.1} parent=0 // pred_region
    _
  $region9: #{masked_cross_entropy_loss.1} parent=0 // pred_fallthru
    _
  %p11 = scmp.eq.s32.totalorder 0, 0
  // Predicated region
  $region10: #{masked_cross_entropy_loss.1} parent=0 // pred_check
    %p12 = pneg %p11
  $region11: #{masked_cross_entropy_loss.1} parent=0 // pred_check_branch
    %14 = sbr.rel (%p12) target = $region13
  $region12: #{masked_cross_entropy_loss.1} parent=0 // pred_region
    %vm15 = vcmask 7168
    %16 = vst.msk [vmem:[#allocation2] sm:$0xff] %vm15, 0.0
    %17 = vst.msk [vmem:[#allocation2 + $0x8] sm:$0xff] %vm15, 0.0
    %18 = vst.msk [vmem:[#allocation2 + $0x10] sm:$0xff] %vm15, 0.0
    %19 = vst.msk [vmem:[#allocation2 + $0x18] sm:$0xff] %vm15, 0.0
    %20 = vst.msk [vmem:[#allocation2 + $0x20] sm:$0xff] %vm15, 0.0
    %21 = vst.msk [vmem:[#allocation2 + $0x28] sm:$0xff] %vm15, 0.0
    %22 = vst.msk [vmem:[#allocation2 + $0x30] sm:$0xff] %vm15, 0.0
    %23 = vst.msk [vmem:[#allocation2 + $0x38] sm:$0xff] %vm15, 0.0
    %24 = vst.msk [vmem:[#allocation3] sm:$0xff] %vm15, 0.0
    %25 = vst.msk [vmem:[#allocation3 + $0x8] sm:$0xff] %vm15, 0.0
    %26 = vst.msk [vmem:[#allocation3 + $0x10] sm:$0xff] %vm15, 0.0
    %27 = vst.msk [vmem:[#allocation3 + $0x18] sm:$0xff] %vm15, 0.0
    %28 = vst.msk [vmem:[#allocation3 + $0x20] sm:$0xff] %vm15, 0.0
    %29 = vst.msk [vmem:[#allocation3 + $0x28] sm:$0xff] %vm15, 0.0
    %30 = vst.msk [vmem:[#allocation3 + $0x30] sm:$0xff] %vm15, 0.0
    %31 = vst.msk [vmem:[#allocation3 + $0x38] sm:$0xff] %vm15, 0.0
  $region13: #{masked_cross_entropy_loss.1} parent=0 // pred_fallthru
    _
  %v32 = vld [vmem:[%s0] sm:$0xff]
  %v33 = vld [vmem:[%s0 + $0x8] sm:$0xff]
  %v34 = vld [vmem:[%s0 + $0x10] sm:$0xff]
  %v35 = vld [vmem:[%s0 + $0x18] sm:$0xff]
  %v36 = vld [vmem:[%s0 + $0x20] sm:$0xff]
  %v37 = vld [vmem:[%s0 + $0x28] sm:$0xff]
  %v38 = vld [vmem:[%s0 + $0x30] sm:$0xff]
  %v39 = vld [vmem:[%s0 + $0x38] sm:$0xff]
  %v40 = vld [vmem:[%s1] sm:$0xff]
  %v41 = vld [vmem:[%s1 + $0x8] sm:$0xff]
  %v42 = vld [vmem:[%s1 + $0x10] sm:$0xff]
  %v43 = vld [vmem:[%s1 + $0x18] sm:$0xff]
  %v44 = vld [vmem:[%s1 + $0x20] sm:$0xff]
  %v45 = vld [vmem:[%s1 + $0x28] sm:$0xff]
  %v46 = vld [vmem:[%s1 + $0x30] sm:$0xff]
  %v47 = vld [vmem:[%s1 + $0x38] sm:$0xff]
  %s48 = smul.u32 0, 64
  %v49 = vlaneseq
  %v50 = vshrl.u32 %v49, 7
  %v51 = vadd.s32 %v50, 8
  %v52 = vadd.s32 %v50, 16
  %v53 = vadd.s32 %v50, 24
  %v54 = vadd.s32 %v50, 32
  %v55 = vadd.s32 %v50, 40
  %v56 = vadd.s32 %v50, 48
  %v57 = vadd.s32 %v50, 56
  %v58 = vstv %s48
  %v59 = vadd.s32 %v58, %v50
  %v60 = vadd.s32 %v58, %v51
  %v61 = vadd.s32 %v58, %v52
  %v62 = vadd.s32 %v58, %v53
  %v63 = vadd.s32 %v58, %v54
  %v64 = vadd.s32 %v58, %v55
  %v65 = vadd.s32 %v58, %v56
  %v66 = vadd.s32 %v58, %v57
  %vm67 = vcmp.ge.s32.totalorder %v40, 0
  %vm68 = vcmp.ge.s32.totalorder %v41, 0
  %vm69 = vcmp.ge.s32.totalorder %v42, 0
  %vm70 = vcmp.ge.s32.totalorder %v43, 0
  %vm71 = vcmp.ge.s32.totalorder %v44, 0
  %vm72 = vcmp.ge.s32.totalorder %v45, 0
  %vm73 = vcmp.ge.s32.totalorder %v46, 0
  %vm74 = vcmp.ge.s32.totalorder %v47, 0
  %vm75 = vcmp.lt.s32.totalorder %v40, 8
  %vm76 = vcmp.lt.s32.totalorder %v41, 8
  %vm77 = vcmp.lt.s32.totalorder %v42, 8
  %vm78 = vcmp.lt.s32.totalorder %v43, 8
  %vm79 = vcmp.lt.s32.totalorder %v44, 8
  %vm80 = vcmp.lt.s32.totalorder %v45, 8
  %vm81 = vcmp.lt.s32.totalorder %v46, 8
  %vm82 = vcmp.lt.s32.totalorder %v47, 8
  %vm83 = vmand %vm67, %vm75
  %vm84 = vmand %vm68, %vm76
  %vm85 = vmand %vm69, %vm77
  %vm86 = vmand %vm70, %vm78
  %vm87 = vmand %vm71, %vm79
  %vm88 = vmand %vm72, %vm80
  %vm89 = vmand %vm73, %vm81
  %vm90 = vmand %vm74, %vm82
  %vm91 = vcmp.lt.s32.totalorder %v59, 64
  %vm92 = vcmp.lt.s32.totalorder %v60, 64
  %vm93 = vcmp.lt.s32.totalorder %v61, 64
  %vm94 = vcmp.lt.s32.totalorder %v62, 64
  %vm95 = vcmp.lt.s32.totalorder %v63, 64
  %vm96 = vcmp.lt.s32.totalorder %v64, 64
  %vm97 = vcmp.lt.s32.totalorder %v65, 64
  %vm98 = vcmp.lt.s32.totalorder %v66, 64
  %vm99 = vmand %vm83, %vm91
  %vm100 = vmand %vm84, %vm92
  %vm101 = vmand %vm85, %vm93
  %vm102 = vmand %vm86, %vm94
  %vm103 = vmand %vm87, %vm95
  %vm104 = vmand %vm88, %vm96
  %vm105 = vmand %vm89, %vm97
  %vm106 = vmand %vm90, %vm98
  %vm107 = vcmask 64512
  %v108 = vsel %vm107, %v32, -inf
  %109 = vmax.xlane.f32.xlu0 %v108
  %v110 = vpop.xlane.xlu0 %109
  %v111 = vsel %vm107, %v33, -inf
  %112 = vmax.xlane.f32.xlu0 %v111
  %v113 = vpop.xlane.xlu0 %112
  %v114 = vsel %vm107, %v34, -inf
  %115 = vmax.xlane.f32.xlu0 %v114
  %v116 = vpop.xlane.xlu0 %115
  %v117 = vsel %vm107, %v35, -inf
  %118 = vmax.xlane.f32.xlu0 %v117
  %v119 = vpop.xlane.xlu0 %118
  %v120 = vsel %vm107, %v36, -inf
  %121 = vmax.xlane.f32.xlu0 %v120
  %v122 = vpop.xlane.xlu0 %121
  %v123 = vsel %vm107, %v37, -inf
  %124 = vmax.xlane.f32.xlu0 %v123
  %v125 = vpop.xlane.xlu0 %124
  %v126 = vsel %vm107, %v38, -inf
  %127 = vmax.xlane.f32.xlu0 %v126
  %v128 = vpop.xlane.xlu0 %127
  %v129 = vsel %vm107, %v39, -inf
  %130 = vmax.xlane.f32.xlu0 %v129
  %v131 = vpop.xlane.xlu0 %130
  %v132 = vsub.f32 %v32, %v110
  %v133 = vsub.f32 %v33, %v113
  %v134 = vsub.f32 %v34, %v116
  %v135 = vsub.f32 %v35, %v119
  %v136 = vsub.f32 %v36, %v122
  %v137 = vsub.f32 %v37, %v125
  %v138 = vsub.f32 %v38, %v128
  %v139 = vsub.f32 %v39, %v131
  %v140 = vmul.f32 %v132, 1.442695
  %v141 = vpow.pop %v140
  %v142 = vmul.f32 %v133, 1.442695
  %v143 = vpow.pop %v142
  %v144 = vmul.f32 %v134, 1.442695
  %v145 = vpow.pop %v144
  %v146 = vmul.f32 %v135, 1.442695
  %v147 = vpow.pop %v146
  %v148 = vmul.f32 %v136, 1.442695
  %v149 = vpow.pop %v148
  %v150 = vmul.f32 %v137, 1.442695
  %v151 = vpow.pop %v150
  %v152 = vmul.f32 %v138, 1.442695
  %v153 = vpow.pop %v152
  %v154 = vmul.f32 %v139, 1.442695
  %v155 = vpow.pop %v154
  %v156 = vsel %vm107, %v141, 0.0
  %157 = vadd.xlane.f32.xlu0 %v156
  %v158 = vpop.xlane.xlu0 %157
  %v159 = vsel %vm107, %v143, 0.0
  %160 = vadd.xlane.f32.xlu0 %v159
  %v161 = vpop.xlane.xlu0 %160
  %v162 = vsel %vm107, %v145, 0.0
  %163 = vadd.xlane.f32.xlu0 %v162
  %v164 = vpop.xlane.xlu0 %163
  %v165 = vsel %vm107, %v147, 0.0
  %166 = vadd.xlane.f32.xlu0 %v165
  %v167 = vpop.xlane.xlu0 %166
  %v168 = vsel %vm107, %v149, 0.0
  %169 = vadd.xlane.f32.xlu0 %v168
  %v170 = vpop.xlane.xlu0 %169
  %v171 = vsel %vm107, %v151, 0.0
  %172 = vadd.xlane.f32.xlu0 %v171
  %v173 = vpop.xlane.xlu0 %172
  %v174 = vsel %vm107, %v153, 0.0
  %175 = vadd.xlane.f32.xlu0 %v174
  %v176 = vpop.xlane.xlu0 %175
  %v177 = vsel %vm107, %v155, 0.0
  %178 = vadd.xlane.f32.xlu0 %v177
  %v179 = vpop.xlane.xlu0 %178
  %v180 = vlog2.pop %v158
  %v181 = vmul.f32 %v180, 0.6931472
  %v182 = vlog2.pop %v161
  %v183 = vmul.f32 %v182, 0.6931472
  %v184 = vlog2.pop %v164
  %v185 = vmul.f32 %v184, 0.6931472
  %v186 = vlog2.pop %v167
  %v187 = vmul.f32 %v186, 0.6931472
  %v188 = vlog2.pop %v170
  %v189 = vmul.f32 %v188, 0.6931472
  %v190 = vlog2.pop %v173
  %v191 = vmul.f32 %v190, 0.6931472
  %v192 = vlog2.pop %v176
  %v193 = vmul.f32 %v192, 0.6931472
  %v194 = vlog2.pop %v179
  %v195 = vmul.f32 %v194, 0.6931472
  %v196 = vadd.f32 %v110, %v181
  %v197 = vadd.f32 %v113, %v183
  %v198 = vadd.f32 %v116, %v185
  %v199 = vadd.f32 %v119, %v187
  %v200 = vadd.f32 %v122, %v189
  %v201 = vadd.f32 %v125, %v191
  %v202 = vadd.f32 %v128, %v193
  %v203 = vadd.f32 %v131, %v195
  %v204 = vlaneseq
  %v205 = vand.u32 %v204, 127
  %206 = vset.pattern.permute.xlu0 0
  %207 = vperm.xlu0 %206, %v40
  %v208 = vpop.permute.xlu0 %207
  %209 = vset.pattern.permute.xlu0 0
  %210 = vperm.xlu0 %209, %v41
  %v211 = vpop.permute.xlu0 %210
  %212 = vset.pattern.permute.xlu0 0
  %213 = vperm.xlu0 %212, %v42
  %v214 = vpop.permute.xlu0 %213
  %215 = vset.pattern.permute.xlu0 0
  %216 = vperm.xlu0 %215, %v43
  %v217 = vpop.permute.xlu0 %216
  %218 = vset.pattern.permute.xlu0 0
  %219 = vperm.xlu0 %218, %v44
  %v220 = vpop.permute.xlu0 %219
  %221 = vset.pattern.permute.xlu0 0
  %222 = vperm.xlu0 %221, %v45
  %v223 = vpop.permute.xlu0 %222
  %224 = vset.pattern.permute.xlu0 0
  %225 = vperm.xlu0 %224, %v46
  %v226 = vpop.permute.xlu0 %225
  %227 = vset.pattern.permute.xlu0 0
  %228 = vperm.xlu0 %227, %v47
  %v229 = vpop.permute.xlu0 %228
  %vm230 = vcmp.eq.s32.totalorder %v205, %v208
  %vm231 = vcmp.eq.s32.totalorder %v205, %v211
  %vm232 = vcmp.eq.s32.totalorder %v205, %v214
  %vm233 = vcmp.eq.s32.totalorder %v205, %v217
  %vm234 = vcmp.eq.s32.totalorder %v205, %v220
  %vm235 = vcmp.eq.s32.totalorder %v205, %v223
  %vm236 = vcmp.eq.s32.totalorder %v205, %v226
  %vm237 = vcmp.eq.s32.totalorder %v205, %v229
  %v238 = vsel %vm230, %v32, 0.0
  %v239 = vsel %vm231, %v33, 0.0
  %v240 = vsel %vm232, %v34, 0.0
  %v241 = vsel %vm233, %v35, 0.0
  %v242 = vsel %vm234, %v36, 0.0
  %v243 = vsel %vm235, %v37, 0.0
  %v244 = vsel %vm236, %v38, 0.0
  %v245 = vsel %vm237, %v39, 0.0
  %v246 = vsel %vm107, %v238, 0.0
  %247 = vadd.xlane.f32.xlu0 %v246
  %v248 = vpop.xlane.xlu0 %247
  %v249 = vsel %vm107, %v239, 0.0
  %250 = vadd.xlane.f32.xlu0 %v249
  %v251 = vpop.xlane.xlu0 %250
  %v252 = vsel %vm107, %v240, 0.0
  %253 = vadd.xlane.f32.xlu0 %v252
  %v254 = vpop.xlane.xlu0 %253
  %v255 = vsel %vm107, %v241, 0.0
  %256 = vadd.xlane.f32.xlu0 %v255
  %v257 = vpop.xlane.xlu0 %256
  %v258 = vsel %vm107, %v242, 0.0
  %259 = vadd.xlane.f32.xlu0 %v258
  %v260 = vpop.xlane.xlu0 %259
  %v261 = vsel %vm107, %v243, 0.0
  %262 = vadd.xlane.f32.xlu0 %v261
  %v263 = vpop.xlane.xlu0 %262
  %v264 = vsel %vm107, %v244, 0.0
  %265 = vadd.xlane.f32.xlu0 %v264
  %v266 = vpop.xlane.xlu0 %265
  %v267 = vsel %vm107, %v245, 0.0
  %268 = vadd.xlane.f32.xlu0 %v267
  %v269 = vpop.xlane.xlu0 %268
  %v270 = vsub.f32 %v196, %v248
  %v271 = vsub.f32 %v197, %v251
  %v272 = vsub.f32 %v198, %v254
  %v273 = vsub.f32 %v199, %v257
  %v274 = vsub.f32 %v200, %v260
  %v275 = vsub.f32 %v201, %v263
  %v276 = vsub.f32 %v202, %v266
  %v277 = vsub.f32 %v203, %v269
  %v278 = vld [vmem:[#allocation2] sm:$0xff]
  %v279 = vld [vmem:[#allocation2 + $0x8] sm:$0xff]
  %v280 = vld [vmem:[#allocation2 + $0x10] sm:$0xff]
  %v281 = vld [vmem:[#allocation2 + $0x18] sm:$0xff]
  %v282 = vld [vmem:[#allocation2 + $0x20] sm:$0xff]
  %v283 = vld [vmem:[#allocation2 + $0x28] sm:$0xff]
  %v284 = vld [vmem:[#allocation2 + $0x30] sm:$0xff]
  %v285 = vld [vmem:[#allocation2 + $0x38] sm:$0xff]
  %v286 = vsel %vm99, %v270, 0.0
  %v287 = vsel %vm100, %v271, 0.0
  %v288 = vsel %vm101, %v272, 0.0
  %v289 = vsel %vm102, %v273, 0.0
  %v290 = vsel %vm103, %v274, 0.0
  %v291 = vsel %vm104, %v275, 0.0
  %v292 = vsel %vm105, %v276, 0.0
  %v293 = vsel %vm106, %v277, 0.0
  %v294 = vadd.f32 %v278, %v286
  %v295 = vadd.f32 %v279, %v287
  %v296 = vadd.f32 %v280, %v288
  %v297 = vadd.f32 %v281, %v289
  %v298 = vadd.f32 %v282, %v290
  %v299 = vadd.f32 %v283, %v291
  %v300 = vadd.f32 %v284, %v292
  %v301 = vadd.f32 %v285, %v293
  %vm302 = vcmask 7168
  %303 = vst.msk [vmem:[#allocation2] sm:$0xff] %vm302, %v294
  %304 = vst.msk [vmem:[#allocation2 + $0x8] sm:$0xff] %vm302, %v295
  %305 = vst.msk [vmem:[#allocation2 + $0x10] sm:$0xff] %vm302, %v296
  %306 = vst.msk [vmem:[#allocation2 + $0x18] sm:$0xff] %vm302, %v297
  %307 = vst.msk [vmem:[#allocation2 + $0x20] sm:$0xff] %vm302, %v298
  %308 = vst.msk [vmem:[#allocation2 + $0x28] sm:$0xff] %vm302, %v299
  %309 = vst.msk [vmem:[#allocation2 + $0x30] sm:$0xff] %vm302, %v300
  %310 = vst.msk [vmem:[#allocation2 + $0x38] sm:$0xff] %vm302, %v301
  %v311 = vld [vmem:[#allocation3] sm:$0xff]
  %v312 = vld [vmem:[#allocation3 + $0x8] sm:$0xff]
  %v313 = vld [vmem:[#allocation3 + $0x10] sm:$0xff]
  %v314 = vld [vmem:[#allocation3 + $0x18] sm:$0xff]
  %v315 = vld [vmem:[#allocation3 + $0x20] sm:$0xff]
  %v316 = vld [vmem:[#allocation3 + $0x28] sm:$0xff]
  %v317 = vld [vmem:[#allocation3 + $0x30] sm:$0xff]
  %v318 = vld [vmem:[#allocation3 + $0x38] sm:$0xff]
  %v319 = vsel %vm99, 1, 0
  %v320 = vsel %vm100, 1, 0
  %v321 = vsel %vm101, 1, 0
  %v322 = vsel %vm102, 1, 0
  %v323 = vsel %vm103, 1, 0
  %v324 = vsel %vm104, 1, 0
  %v325 = vsel %vm105, 1, 0
  %v326 = vsel %vm106, 1, 0
  %v327 = vcvt.s32.f32 %v319
  %v328 = vcvt.s32.f32 %v320
  %v329 = vcvt.s32.f32 %v321
  %v330 = vcvt.s32.f32 %v322
  %v331 = vcvt.s32.f32 %v323
  %v332 = vcvt.s32.f32 %v324
  %v333 = vcvt.s32.f32 %v325
  %v334 = vcvt.s32.f32 %v326
  %v335 = vadd.f32 %v311, %v327
  %v336 = vadd.f32 %v312, %v328
  %v337 = vadd.f32 %v313, %v329
  %v338 = vadd.f32 %v314, %v330
  %v339 = vadd.f32 %v315, %v331
  %v340 = vadd.f32 %v316, %v332
  %v341 = vadd.f32 %v317, %v333
  %v342 = vadd.f32 %v318, %v334
  %343 = vst.msk [vmem:[#allocation3] sm:$0xff] %vm302, %v335
  %344 = vst.msk [vmem:[#allocation3 + $0x8] sm:$0xff] %vm302, %v336
  %345 = vst.msk [vmem:[#allocation3 + $0x10] sm:$0xff] %vm302, %v337
  %346 = vst.msk [vmem:[#allocation3 + $0x18] sm:$0xff] %vm302, %v338
  %347 = vst.msk [vmem:[#allocation3 + $0x20] sm:$0xff] %vm302, %v339
  %348 = vst.msk [vmem:[#allocation3 + $0x28] sm:$0xff] %vm302, %v340
  %349 = vst.msk [vmem:[#allocation3 + $0x30] sm:$0xff] %vm302, %v341
  %350 = vst.msk [vmem:[#allocation3 + $0x38] sm:$0xff] %vm302, %v342
  // Predicated region
  $region14: #{masked_cross_entropy_loss.1} parent=0 // pred_check
    %p351 = pneg %p11
  $region15: #{masked_cross_entropy_loss.1} parent=0 // pred_check_branch
    %353 = sbr.rel (%p351) target = $region17
  $region16: #{masked_cross_entropy_loss.1} parent=0 // pred_region
    %v354 = vld [vmem:[#allocation2] sm:$0xff]
    %v355 = vld [vmem:[#allocation2 + $0x8] sm:$0xff]
    %v356 = vld [vmem:[#allocation2 + $0x10] sm:$0xff]
    %v357 = vld [vmem:[#allocation2 + $0x18] sm:$0xff]
    %v358 = vld [vmem:[#allocation2 + $0x20] sm:$0xff]
    %v359 = vld [vmem:[#allocation2 + $0x28] sm:$0xff]
    %v360 = vld [vmem:[#allocation2 + $0x30] sm:$0xff]
    %v361 = vld [vmem:[#allocation2 + $0x38] sm:$0xff]
    %v362 = vsel %vm302, %v354, 0.0
    %v363 = vsel %vm302, %v355, 0.0
    %v364 = vadd.f32 %v362, %v363
    %v365 = vsel %vm302, %v356, 0.0
    %v366 = vadd.f32 %v364, %v365
    %v367 = vsel %vm302, %v357, 0.0
    %v368 = vadd.f32 %v366, %v367
    %v369 = vsel %vm302, %v358, 0.0
    %v370 = vadd.f32 %v368, %v369
    %v371 = vsel %vm302, %v359, 0.0
    %v372 = vadd.f32 %v370, %v371
    %v373 = vsel %vm302, %v360, 0.0
    %v374 = vadd.f32 %v372, %v373
    %v375 = vsel %vm302, %v361, 0.0
    %v376 = vadd.f32 %v374, %v375
    %377 = vadd.xlane.f32.xlu0 %v376
    %v378 = vpop.xlane.xlu0 %377
    %v379 = vrot.slane %v378, 4
    %v380 = vadd.f32 %v378, %v379
    %v381 = vrot.slane %v380, 2
    %v382 = vadd.f32 %v380, %v381
    %v383 = vrot.slane %v382, 1
    %v384 = vadd.f32 %v382, %v383
    %s385 = vtos %v384
    %v386 = vld [vmem:[#allocation3] sm:$0xff]
    %v387 = vld [vmem:[#allocation3 + $0x8] sm:$0xff]
    %v388 = vld [vmem:[#allocation3 + $0x10] sm:$0xff]
    %v389 = vld [vmem:[#allocation3 + $0x18] sm:$0xff]
    %v390 = vld [vmem:[#allocation3 + $0x20] sm:$0xff]
    %v391 = vld [vmem:[#allocation3 + $0x28] sm:$0xff]
    %v392 = vld [vmem:[#allocation3 + $0x30] sm:$0xff]
    %v393 = vld [vmem:[#allocation3 + $0x38] sm:$0xff]
    %v394 = vsel %vm302, %v386, 0.0
    %v395 = vsel %vm302, %v387, 0.0
    %v396 = vadd.f32 %v394, %v395
    %v397 = vsel %vm302, %v388, 0.0
    %v398 = vadd.f32 %v396, %v397
    %v399 = vsel %vm302, %v389, 0.0
    %v400 = vadd.f32 %v398, %v399
    %v401 = vsel %vm302, %v390, 0.0
    %v402 = vadd.f32 %v400, %v401
    %v403 = vsel %vm302, %v391, 0.0
    %v404 = vadd.f32 %v402, %v403
    %v405 = vsel %vm302, %v392, 0.0
    %v406 = vadd.f32 %v404, %v405
    %v407 = vsel %vm302, %v393, 0.0
    %v408 = vadd.f32 %v406, %v407
    %409 = vadd.xlane.f32.xlu0 %v408
    %v410 = vpop.xlane.xlu0 %409
    %v411 = vrot.slane %v410, 4
    %v412 = vadd.f32 %v410, %v411
    %v413 = vrot.slane %v412, 2
    %v414 = vadd.f32 %v412, %v413
    %v415 = vrot.slane %v414, 1
    %v416 = vadd.f32 %v414, %v415
    %s417 = vtos %v416
    %vm418 = vcmp.eq.s32.totalorder %v205, 0
    %vm419 = vcmp.eq.s32.totalorder %v205, 1
    %v420 = vstv %s417
    %v421 = vsel %vm419, %v420, 0.0
    %v422 = vstv %s385
    %v423 = vsel %vm418, %v422, %v421
    %424 = vst [vmem:[%s2] sm:$0x1] %v423
  $region17: #{masked_cross_entropy_loss.1} parent=0 // pred_fallthru
    _
  // Predicated region
  $region18: #{masked_cross_entropy_loss.1} parent=0 // pred_check
    _
  $region19: #{masked_cross_entropy_loss.1} parent=0 // pred_check_branch
    %426 = sbr.rel (0) target = $region21
  $region20: #{masked_cross_entropy_loss.1} parent=0 // pred_region
    _
  $region21: #{masked_cross_entropy_loss.1} parent=0 // pred_fallthru
    _
  // Predicated region
  $region22: #{masked_cross_entropy_loss.1} parent=0 // pred_check
    _
  $region23: #{masked_cross_entropy_loss.1} parent=0 // pred_check_branch
    %428 = sbr.rel (0) target = $region25
  $region24: #{masked_cross_entropy_loss.1} parent=0 // pred_region
    _
  $region25: #{masked_cross_entropy_loss.1} parent=0 // pred_fallthru
    _

</llo_original>
